<compile_context>
chip_gen: v6e
topology: v6e:2x2x1
jax: 0.10.0
libtpu: 0.0.40
codegen_flags: <defaults>
</compile_context>

<pallas_src>
import functools

import jax
import jax.numpy as jnp
from jax.experimental import pallas as pl
from jax.experimental.pallas import tpu as pltpu

_LANE = 128
_SUB = 8
_MIN_PALLAS_ELEMS = 1024   # below this the pallas_call fixed cost dominates


def _make_kernel(B, N, tile_rows, has_pad, use_std_as_weight):
    """Kernel for one (side, N-tile) grid step.

    data block  : (1, 5, B, tile_rows, 128)  planes = [x, y, loc_x, loc_y, std]
    out block   : (1, 8, 128)                row 0 = loss, row 1 = mask fraction
    acc scratch : (n_planes, 8, 128)         resident partial sums per side
    """
    n_elem = float(B * N)
    inv_n = 1.0 / n_elem
    n_planes = 4 if use_std_as_weight else 2
    fold = tile_rows // _SUB

    def _fold8(p):
        # (tile_rows, 128) -> (8, 128) by summing 8-sublane groups.  The static
        # slices land exactly on (8,128) vreg boundaries -> plain vector adds.
        tot = p[0:_SUB, :]
        for i in range(1, fold):
            tot = tot + p[i * _SUB:(i + 1) * _SUB, :]
        return tot

    def kernel(thr_ref, f_ref, data_ref, out_ref, acc_ref):
        s = pl.program_id(0)               # image side (0 or 1)
        t = pl.program_id(1)               # N tile
        thr = thr_ref[0]                   # runtime threshold scalar (SMEM)

        @pl.when(t == 0)
        def _():
            acc_ref[...] = jnp.zeros_like(acc_ref)

        if has_pad:
            # Validity of padded tail points, computed once per tile from iota.
            row = jax.lax.broadcasted_iota(jnp.int32, (tile_rows, _LANE), 0)
            lane = jax.lax.broadcasted_iota(jnp.int32, (tile_rows, _LANE), 1)
            gidx = (t * tile_rows + row) * _LANE + lane
            validf = (gidx < N).astype(jnp.float32)

        totals = None
        for b in range(B):                 # B is small -> static unroll
            x = data_ref[0, 0, b]          # (tile_rows, 128)
            y = data_ref[0, 1, b]
            lx = data_ref[0, 2, b]
            ly = data_ref[0, 3, b]
            std = data_ref[0, 4, b]

            base = b * 9                   # per-batch 3x3 F as 9 SMEM scalars
            f00 = f_ref[s, base + 0]
            f01 = f_ref[s, base + 1]
            f02 = f_ref[s, base + 2]
            f10 = f_ref[s, base + 3]
            f11 = f_ref[s, base + 4]
            f12 = f_ref[s, base + 5]
            f20 = f_ref[s, base + 6]
            f21 = f_ref[s, base + 7]
            f22 = f_ref[s, base + 8]

            # Epipolar line; homogeneous "ones" row folded in as a bias.
            e0 = f00 * x + f01 * y + f02
            e1 = f10 * x + f11 * y + f12
            e2 = f20 * x + f21 * y + f22

            # cost = |<loc_h, line>| / clamp(||line[:2]||, 1e-8)
            num = lx * e0 + ly * e1 + e2
            inv_norm = jax.lax.rsqrt(jnp.maximum(e0 * e0 + e1 * e1, 1e-16))
            cost = jnp.abs(num) * inv_norm

            lt = cost < thr
            if has_pad:
                maskf = jnp.where(lt, validf, 0.0)
            else:
                maskf = jnp.where(lt, 1.0, 0.0)

            if use_std_as_weight:
                inv_std = pl.reciprocal(jnp.maximum(std, 1e-10), approx=False)
                inv_std_v = inv_std * validf if has_pad else inv_std
                im = maskf * inv_std
                planes = (maskf, inv_std_v, im, im * cost)
            else:
                planes = (maskf, maskf * cost)

            contrib = [_fold8(p) for p in planes]
            totals = (contrib if totals is None
                      else [a + c for a, c in zip(totals, contrib)])

        for idx in range(n_planes):
            acc_ref[idx] += totals[idx]

        @pl.when(t == pl.num_programs(1) - 1)
        def _():
            s_mask = jnp.sum(acc_ref[0])
            if use_std_as_weight:
                # weight = (inv_std/mean(inv_std))*mask; weight /= mean(weight)+1e-8
                # loss = mean(weight*cost)  ==  S_imc / (S_im + 1e-8 * S_inv)
                s_inv = jnp.sum(acc_ref[1])
                s_im = jnp.sum(acc_ref[2])
                s_imc = jnp.sum(acc_ref[3])
                loss = s_imc / (s_im + 1e-8 * s_inv)
            else:
                # weight = mask; weight /= mean(weight)+1e-8
                # loss == S_mc / (S_mask + 1e-8 * n_elem)
                s_mc = jnp.sum(acc_ref[1])
                loss = s_mc / (s_mask + 1e-8 * n_elem)
            pct = s_mask * inv_n

            # Single lane-dense (8,128) result tile: row 0 = loss, row 1 = pct.
            row8 = jax.lax.broadcasted_iota(jnp.int32, (_SUB, _LANE), 0)
            out_ref[0] = jnp.where(row8 == 0, loss,
                                   jnp.where(row8 == 1, pct, 0.0))

    return kernel


def _choose_tile_rows(nt, B):
    # Aim for ~1 MiB per input block (the pipeline double-buffers it).
    bytes_per_row = 5 * B * _LANE * 4
    target = max(_SUB, (1 << 20) // bytes_per_row)
    return max(_SUB, (min(nt, target) // _SUB) * _SUB)


def _plane_stack(coord, loc, std, n_pad, nt):
    """(B,N,2),(B,N,2),(B,N) -> (5, B, NT, 128) sublane/lane-dense planes."""
    B, N = std.shape
    pad = n_pad - N

    def prep(p, pad_value):
        p = p.astype(jnp.float32)
        if pad:
            p = jnp.pad(p, ((0, 0), (0, pad)), constant_values=pad_value)
        return p.reshape(B, nt, _LANE)

    return jnp.stack([prep(coord[..., 0], 0.0), prep(coord[..., 1], 0.0),
                      prep(loc[..., 0], 0.0), prep(loc[..., 1], 0.0),
                      prep(std, 1.0)], axis=0)


@functools.partial(jax.jit, static_argnames=("use_std_as_weight", "tile_rows"))
def _epipolar_pallas(coord1, loc1, std1, F1, coord2, loc2, std2, F2, thr_arr,
                     *, use_std_as_weight, tile_rows=None):
    B, N = std1.shape
    nt0 = pl.cdiv(N, _LANE)
    if tile_rows is None:
        tile_rows = _choose_tile_rows(nt0, B)
    else:
        tile_rows = max(_SUB, (int(tile_rows) // _SUB) * _SUB)
    num_t = pl.cdiv(nt0, tile_rows)
    nt = num_t * tile_rows
    n_pad = nt * _LANE
    has_pad = (n_pad != N)

    # TODO(synk): this repack costs one extra HBM round-trip; remove it by having
    # the producer emit plane-major tensors, or by fusing it into the pallas
    # input DMA via CompilerParams(allow_input_fusion=...).
    data = jnp.stack([_plane_stack(coord1, loc1, std1, n_pad, nt),
                      _plane_stack(coord2, loc2, std2, n_pad, nt)], axis=0)
    f_flat = jnp.stack([F1.astype(jnp.float32).reshape(B * 9),
                        F2.astype(jnp.float32).reshape(B * 9)], axis=0)  # (2, B*9)

    kernel = _make_kernel(B, N, tile_rows, has_pad, use_std_as_weight)
    n_planes = 4 if use_std_as_weight else 2

    grid_spec = pltpu.PrefetchScalarGridSpec(
        num_scalar_prefetch=2,                    # thr (1,), F (2, B*9) -> SMEM
        grid=(2, num_t),                          # (image side, N tile)
        in_specs=[
            pl.BlockSpec((1, 5, B, tile_rows, _LANE),
                         lambda s, t, thr, f: (s, 0, 0, t, 0)),
        ],
        out_specs=pl.BlockSpec((1, _SUB, _LANE), lambda s, t, thr, f: (s, 0, 0)),
        scratch_shapes=[pltpu.VMEM((n_planes, _SUB, _LANE), jnp.float32)],
    )
    return pl.pallas_call(
        kernel,
        out_shape=jax.ShapeDtypeStruct((2, _SUB, _LANE), jnp.float32),
        grid_spec=grid_spec,
        compiler_params=pltpu.CompilerParams(
            # NOTE: on v7x switch the side axis to pltpu.CORE_PARALLEL if the
            # trace shows the two sides are not sharded across the TensorCores.
            dimension_semantics=("parallel", "arbitrary"),
            vmem_limit_bytes=32 * 1024 * 1024,
        ),
    )(thr_arr, f_flat, data)


def _jax_side_stats(coord1, loc1, std1, F1, coord2, loc2, std2, F2, thr,
                    use_std_as_weight):
    """Fused pure-JAX forward: fallback for tiny inputs and reference check."""
    def cost_fn(coord, loc, fmat):
        ones = jnp.ones(coord.shape[:-1] + (1,), coord.dtype)
        ch = jnp.transpose(jnp.concatenate([coord, ones], -1), (0, 2, 1))
        lh = jnp.transpose(jnp.concatenate([loc, ones], -1), (0, 2, 1))
        line = jnp.einsum('bij,bjn->bin', fmat, ch,
                          precision=jax.lax.Precision.HIGHEST)
        nrm = jnp.linalg.norm(line[:, :2, :], axis=1, keepdims=True)
        line = line / jnp.maximum(nrm, 1e-8)
        return jnp.abs(jnp.sum(lh * line, axis=1))

    def side(cost, std):
        mask = (cost < thr).astype(jnp.float32)
        if use_std_as_weight:
            w = 1.0 / jnp.maximum(std, 1e-10)
            w = w / jnp.mean(w)
        else:
            w = jnp.ones_like(std)
        w = w * mask
        w = w / (jnp.mean(w) + 1e-8)
        return jnp.mean(w * cost), jnp.mean(mask)

    l1, p1 = side(cost_fn(coord1, loc1, F1), std1)
    l2, p2 = side(cost_fn(coord2, loc2, F2), std2)
    return l1, l2, 0.5 * (p1 + p2)


def epipolar_loss_forward(inputs, outputs, processed, config):
    coord1 = processed['coord1']
    coord2 = processed['coord2']
    loc1 = processed['feat1w_corloc']
    loc2 = processed['feat2w_corloc']
    std1 = processed['feat1w_std']
    std2 = processed['feat2w_std']
    F1 = inputs['F1']
    F2 = inputs['F2']

    im_size1 = inputs['im1'].shape[2:]
    thr = float(min(im_size1)) * float(config['win_cost_thr'])
    use_std = bool(config['use_std_as_weight'])

    # TODO(synk): optional 'valid_epi1'/'valid_epi2' masks are not modeled (that
    # torch branch only runs when those keys exist in `processed`).

    B, N = std1.shape
    if B * N < _MIN_PALLAS_ELEMS:
        # Tiny problem: pallas_call fixed cost dominates -> fused XLA path.
        loss_w1, loss_w2, percent_w = _jax_side_stats(
            coord1, loc1, std1, F1, coord2, loc2, std2, F2, thr, use_std)
    else:
        thr_arr = jnp.array([thr], dtype=jnp.float32)   # runtime scalar -> no recompile
        out = _epipolar_pallas(coord1, loc1, std1, F1, coord2, loc2, std2, F2,
                               thr_arr, use_std_as_weight=use_std,
                               tile_rows=config.get('pallas_tile_rows', None))
        loss_w1 = out[0, 0, 0]
        loss_w2 = out[1, 0, 0]
        percent_w = 0.5 * (out[0, 1, 0] + out[1, 1, 0])

    loss = loss_w1 + loss_w2
    components = {'loss_w1': loss_w1, 'loss_w2': loss_w2, 'percent_w': percent_w}
    return loss, components


if __name__ == "__main__":
    def build_case(key, B, N, C, H, W):
        ks = jax.random.split(key, 10)
        coord1 = jax.random.uniform(ks[0], (B, N, 2), jnp.float32, 0.0, float(W - 1))
        coord2 = jax.random.uniform(ks[1], (B, N, 2), jnp.float32, 0.0, float(W - 1))
        loc1 = jax.random.uniform(ks[2], (B, N, 2), jnp.float32, 0.0, float(W - 1))
        loc2 = jax.random.uniform(ks[3], (B, N, 2), jnp.float32, 0.0, float(W - 1))
        std1 = jax.random.uniform(ks[4], (B, N), jnp.float32, 0.1, 1.0)
        std2 = jax.random.uniform(ks[5], (B, N), jnp.float32, 0.1, 1.0)
        F1 = jax.random.normal(ks[6], (B, 3, 3), jnp.float32) * 0.05
        F2 = jax.random.normal(ks[7], (B, 3, 3), jnp.float32) * 0.05
        im1 = jax.random.normal(ks[8], (B, C, H, W), jnp.float32)
        im2 = jax.random.normal(ks[9], (B, C, H, W), jnp.float32)
        inputs = {'F1': F1, 'F2': F2, 'im1': im1, 'im2': im2}
        processed = {'coord1': coord1, 'coord2': coord2, 'temperature': 1.0,
                     'feat1w_corloc': loc1, 'feat2w_corloc': loc2,
                     'feat1w_std': std1, 'feat2w_std': std2}
        return inputs, processed

    def check(inputs, processed, config):
        loss, comps = epipolar_loss_forward(inputs, {}, processed, config)
        loss = jax.block_until_ready(loss)
        thr = float(min(inputs['im1'].shape[2:])) * float(config['win_cost_thr'])
        r1, r2, rp = _jax_side_stats(
            processed['coord1'], processed['feat1w_corloc'],
            processed['feat1w_std'], inputs['F1'],
            processed['coord2'], processed['feat2w_corloc'],
            processed['feat2w_std'], inputs['F2'], thr,
            bool(config['use_std_as_weight']))
        assert jnp.allclose(loss, r1 + r2, rtol=1e-4, atol=1e-5), (loss, r1 + r2)
        assert jnp.allclose(comps['loss_w1'], r1, rtol=1e-4, atol=1e-5)
        assert jnp.allclose(comps['loss_w2'], r2, rtol=1e-4, atol=1e-5)
        assert jnp.allclose(comps['percent_w'], rp, rtol=1e-4, atol=1e-5)

    key = jax.random.PRNGKey(0)
    k1, k2 = jax.random.split(key)

    # Case 1: std-weighted branch, N a multiple of 128, auto-chosen tile.
    inputs1, processed1 = build_case(k1, B=2, N=2048, C=4, H=16, W=16)
    check(inputs1, processed1, {'use_std_as_weight': True, 'win_cost_thr': 0.5})

    # Case 2: ones-weighted branch, ragged N (exercises padding / validity
    # masking) with a forced small tile (exercises the multi-tile accumulator).
    inputs2, processed2 = build_case(k2, B=2, N=2000, C=4, H=16, W=16)
    check(inputs2, processed2, {'use_std_as_weight': False, 'win_cost_thr': 0.25,
                                'pallas_tile_rows': 8})

    print("KERNEL_OK")
</pallas_src>

<mosaic_0001>
module attributes {stable_mosaic.version = 11 : i64} {
  func.func @kernel(%arg0: i32, %arg1: i32, %arg2: memref<1xf32, #tpu.memory_space<smem>>, %arg3: memref<2x18xf32, #tpu.memory_space<smem>>, %arg4: memref<1x5x2x16x128xf32, #tpu.memory_space<vmem>>, %arg5: memref<1x8x128xf32, #tpu.memory_space<vmem>>, %arg6: memref<4x8x128xf32, #tpu.memory_space<vmem>>) attributes {dimension_semantics = [#tpu.dimension_semantics<parallel>, #tpu.dimension_semantics<arbitrary>], iteration_bounds = array<i64: 2, 1>, scalar_prefetch = 2 : i64, scratch_operands = 1 : i64, tpu.core_type = #tpu.core_type<tc>, window_params = [{transform_indices = @transform_0, window_bounds = array<i64: 1, 5, 2, 16, 128>}, {transform_indices = @transform_1, window_bounds = array<i64: 1, 8, 128>}]} {
    %c0 = arith.constant 0 : index
    %0 = memref.load %arg2[%c0] : memref<1xf32, #tpu.memory_space<smem>>
    %c0_i32 = arith.constant 0 : i32
    %1 = arith.cmpi eq, %arg1, %c0_i32 : i32
    %2 = arith.extui %1 : i1 to i32
    %c0_i32_0 = arith.constant 0 : i32
    %3 = arith.cmpi ne, %2, %c0_i32_0 : i32
    scf.if %3 {
      %cst_85 = arith.constant 0.000000e+00 : f32
      %201 = vector.broadcast %cst_85 : f32 to vector<4x8x128xf32>
      %c0_86 = arith.constant 0 : index
      %c0_87 = arith.constant 0 : index
      %c0_88 = arith.constant 0 : index
      %202 = vector.load %arg6[%c0_86, %c0_87, %c0_88] : memref<4x8x128xf32, #tpu.memory_space<vmem>>, vector<4x8x128xf32>
      tpu.vector_store %arg6[%c0_86, %c0_87, %c0_88], %201 {strides = array<i32>} : memref<4x8x128xf32, #tpu.memory_space<vmem>>, vector<4x8x128xf32>,
    } else {
    }
    %c0_1 = arith.constant 0 : index
    %c0_2 = arith.constant 0 : index
    %c0_3 = arith.constant 0 : index
    %c0_4 = arith.constant 0 : index
    %c0_5 = arith.constant 0 : index
    %4 = vector.load %arg4[%c0_1, %c0_2, %c0_3, %c0_4, %c0_5] : memref<1x5x2x16x128xf32, #tpu.memory_space<vmem>>, vector<1x1x1x16x128xf32>
    %5 = vector.shape_cast %4 : vector<1x1x1x16x128xf32> to vector<16x128xf32>
    %c0_6 = arith.constant 0 : index
    %c1 = arith.constant 1 : index
    %c0_7 = arith.constant 0 : index
    %c0_8 = arith.constant 0 : index
    %c0_9 = arith.constant 0 : index
    %6 = vector.load %arg4[%c0_6, %c1, %c0_7, %c0_8, %c0_9] : memref<1x5x2x16x128xf32, #tpu.memory_space<vmem>>, vector<1x1x1x16x128xf32>
    %7 = vector.shape_cast %6 : vector<1x1x1x16x128xf32> to vector<16x128xf32>
    %c0_10 = arith.constant 0 : index
    %c2 = arith.constant 2 : index
    %c0_11 = arith.constant 0 : index
    %c0_12 = arith.constant 0 : index
    %c0_13 = arith.constant 0 : index
    %8 = vector.load %arg4[%c0_10, %c2, %c0_11, %c0_12, %c0_13] : memref<1x5x2x16x128xf32, #tpu.memory_space<vmem>>, vector<1x1x1x16x128xf32>
    %9 = vector.shape_cast %8 : vector<1x1x1x16x128xf32> to vector<16x128xf32>
    %c0_14 = arith.constant 0 : index
    %c3 = arith.constant 3 : index
    %c0_15 = arith.constant 0 : index
    %c0_16 = arith.constant 0 : index
    %c0_17 = arith.constant 0 : index
    %10 = vector.load %arg4[%c0_14, %c3, %c0_15, %c0_16, %c0_17] : memref<1x5x2x16x128xf32, #tpu.memory_space<vmem>>, vector<1x1x1x16x128xf32>
    %11 = vector.shape_cast %10 : vector<1x1x1x16x128xf32> to vector<16x128xf32>
    %c0_18 = arith.constant 0 : index
    %c4 = arith.constant 4 : index
    %c0_19 = arith.constant 0 : index
    %c0_20 = arith.constant 0 : index
    %c0_21 = arith.constant 0 : index
    %12 = vector.load %arg4[%c0_18, %c4, %c0_19, %c0_20, %c0_21] : memref<1x5x2x16x128xf32, #tpu.memory_space<vmem>>, vector<1x1x1x16x128xf32>
    %13 = vector.shape_cast %12 : vector<1x1x1x16x128xf32> to vector<16x128xf32>
    %14 = arith.index_cast %arg0 : i32 to index
    %c0_22 = arith.constant 0 : index
    %15 = memref.load %arg3[%14, %c0_22] : memref<2x18xf32, #tpu.memory_space<smem>>
    %16 = arith.index_cast %arg0 : i32 to index
    %c1_23 = arith.constant 1 : index
    %17 = memref.load %arg3[%16, %c1_23] : memref<2x18xf32, #tpu.memory_space<smem>>
    %18 = arith.index_cast %arg0 : i32 to index
    %c2_24 = arith.constant 2 : index
    %19 = memref.load %arg3[%18, %c2_24] : memref<2x18xf32, #tpu.memory_space<smem>>
    %20 = arith.index_cast %arg0 : i32 to index
    %c3_25 = arith.constant 3 : index
    %21 = memref.load %arg3[%20, %c3_25] : memref<2x18xf32, #tpu.memory_space<smem>>
    %22 = arith.index_cast %arg0 : i32 to index
    %c4_26 = arith.constant 4 : index
    %23 = memref.load %arg3[%22, %c4_26] : memref<2x18xf32, #tpu.memory_space<smem>>
    %24 = arith.index_cast %arg0 : i32 to index
    %c5 = arith.constant 5 : index
    %25 = memref.load %arg3[%24, %c5] : memref<2x18xf32, #tpu.memory_space<smem>>
    %26 = arith.index_cast %arg0 : i32 to index
    %c6 = arith.constant 6 : index
    %27 = memref.load %arg3[%26, %c6] : memref<2x18xf32, #tpu.memory_space<smem>>
    %28 = arith.index_cast %arg0 : i32 to index
    %c7 = arith.constant 7 : index
    %29 = memref.load %arg3[%28, %c7] : memref<2x18xf32, #tpu.memory_space<smem>>
    %30 = arith.index_cast %arg0 : i32 to index
    %c8 = arith.constant 8 : index
    %31 = memref.load %arg3[%30, %c8] : memref<2x18xf32, #tpu.memory_space<smem>>
    %32 = vector.broadcast %15 : f32 to vector<16x128xf32>
    %33 = arith.mulf %32, %5 : vector<16x128xf32>
    %34 = vector.broadcast %17 : f32 to vector<16x128xf32>
    %35 = arith.mulf %34, %7 : vector<16x128xf32>
    %36 = arith.addf %33, %35 : vector<16x128xf32>
    %37 = vector.broadcast %19 : f32 to vector<16x128xf32>
    %38 = arith.addf %36, %37 : vector<16x128xf32>
    %39 = vector.broadcast %21 : f32 to vector<16x128xf32>
    %40 = arith.mulf %39, %5 : vector<16x128xf32>
    %41 = vector.broadcast %23 : f32 to vector<16x128xf32>
    %42 = arith.mulf %41, %7 : vector<16x128xf32>
    %43 = arith.addf %40, %42 : vector<16x128xf32>
    %44 = vector.broadcast %25 : f32 to vector<16x128xf32>
    %45 = arith.addf %43, %44 : vector<16x128xf32>
    %46 = vector.broadcast %27 : f32 to vector<16x128xf32>
    %47 = arith.mulf %46, %5 : vector<16x128xf32>
    %48 = vector.broadcast %29 : f32 to vector<16x128xf32>
    %49 = arith.mulf %48, %7 : vector<16x128xf32>
    %50 = arith.addf %47, %49 : vector<16x128xf32>
    %51 = vector.broadcast %31 : f32 to vector<16x128xf32>
    %52 = arith.addf %50, %51 : vector<16x128xf32>
    %53 = arith.mulf %9, %38 : vector<16x128xf32>
    %54 = arith.mulf %11, %45 : vector<16x128xf32>
    %55 = arith.addf %53, %54 : vector<16x128xf32>
    %56 = arith.addf %55, %52 : vector<16x128xf32>
    %57 = arith.mulf %38, %38 : vector<16x128xf32>
    %58 = arith.mulf %45, %45 : vector<16x128xf32>
    %59 = arith.addf %57, %58 : vector<16x128xf32>
    %cst = arith.constant 1.000000e-16 : f32
    %60 = vector.broadcast %cst : f32 to vector<16x128xf32>
    %61 = arith.maximumf %59, %60 : vector<16x128xf32>
    %62 = math.rsqrt %61 : vector<16x128xf32>
    %63 = math.absf %56 : vector<16x128xf32>
    %64 = arith.mulf %63, %62 : vector<16x128xf32>
    %65 = vector.broadcast %0 : f32 to vector<16x128xf32>
    %66 = arith.cmpf olt, %64, %65 : vector<16x128xf32>
    %cst_27 = arith.constant 1.000000e+00 : f32
    %cst_28 = arith.constant 0.000000e+00 : f32
    %67 = vector.broadcast %cst_27 : f32 to vector<16x128xf32>
    %68 = vector.broadcast %cst_28 : f32 to vector<16x128xf32>
    %69 = arith.select %66, %67, %68 : vector<16x128xi1>, vector<16x128xf32>
    %cst_29 = arith.constant 1.000000e-10 : f32
    %70 = vector.broadcast %cst_29 : f32 to vector<16x128xf32>
    %71 = arith.maximumf %13, %70 : vector<16x128xf32>
    %72 = tpu.reciprocal %71 : vector<16x128xf32> -> vector<16x128xf32>
    %73 = arith.mulf %69, %72 : vector<16x128xf32>
    %74 = arith.mulf %73, %64 : vector<16x128xf32>
    %75 = vector.extract_strided_slice %69 {offsets = [0, 0], sizes = [8, 128], strides = [1, 1]} : vector<16x128xf32> to vector<8x128xf32>
    %76 = vector.extract_strided_slice %69 {offsets = [8, 0], sizes = [8, 128], strides = [1, 1]} : vector<16x128xf32> to vector<8x128xf32>
    %77 = arith.addf %75, %76 : vector<8x128xf32>
    %78 = vector.extract_strided_slice %72 {offsets = [0, 0], sizes = [8, 128], strides = [1, 1]} : vector<16x128xf32> to vector<8x128xf32>
    %79 = vector.extract_strided_slice %72 {offsets = [8, 0], sizes = [8, 128], strides = [1, 1]} : vector<16x128xf32> to vector<8x128xf32>
    %80 = arith.addf %78, %79 : vector<8x128xf32>
    %81 = vector.extract_strided_slice %73 {offsets = [0, 0], sizes = [8, 128], strides = [1, 1]} : vector<16x128xf32> to vector<8x128xf32>
    %82 = vector.extract_strided_slice %73 {offsets = [8, 0], sizes = [8, 128], strides = [1, 1]} : vector<16x128xf32> to vector<8x128xf32>
    %83 = arith.addf %81, %82 : vector<8x128xf32>
    %84 = vector.extract_strided_slice %74 {offsets = [0, 0], sizes = [8, 128], strides = [1, 1]} : vector<16x128xf32> to vector<8x128xf32>
    %85 = vector.extract_strided_slice %74 {offsets = [8, 0], sizes = [8, 128], strides = [1, 1]} : vector<16x128xf32> to vector<8x128xf32>
    %86 = arith.addf %84, %85 : vector<8x128xf32>
    %c0_30 = arith.constant 0 : index
    %c0_31 = arith.constant 0 : index
    %c1_32 = arith.constant 1 : index
    %c0_33 = arith.constant 0 : index
    %c0_34 = arith.constant 0 : index
    %87 = vector.load %arg4[%c0_30, %c0_31, %c1_32, %c0_33, %c0_34] : memref<1x5x2x16x128xf32, #tpu.memory_space<vmem>>, vector<1x1x1x16x128xf32>
    %88 = vector.shape_cast %87 : vector<1x1x1x16x128xf32> to vector<16x128xf32>
    %c0_35 = arith.constant 0 : index
    %c1_36 = arith.constant 1 : index
    %c1_37 = arith.constant 1 : index
    %c0_38 = arith.constant 0 : index
    %c0_39 = arith.constant 0 : index
    %89 = vector.load %arg4[%c0_35, %c1_36, %c1_37, %c0_38, %c0_39] : memref<1x5x2x16x128xf32, #tpu.memory_space<vmem>>, vector<1x1x1x16x128xf32>
    %90 = vector.shape_cast %89 : vector<1x1x1x16x128xf32> to vector<16x128xf32>
    %c0_40 = arith.constant 0 : index
    %c2_41 = arith.constant 2 : index
    %c1_42 = arith.constant 1 : index
    %c0_43 = arith.constant 0 : index
    %c0_44 = arith.constant 0 : index
    %91 = vector.load %arg4[%c0_40, %c2_41, %c1_42, %c0_43, %c0_44] : memref<1x5x2x16x128xf32, #tpu.memory_space<vmem>>, vector<1x1x1x16x128xf32>
    %92 = vector.shape_cast %91 : vector<1x1x1x16x128xf32> to vector<16x128xf32>
    %c0_45 = arith.constant 0 : index
    %c3_46 = arith.constant 3 : index
    %c1_47 = arith.constant 1 : index
    %c0_48 = arith.constant 0 : index
    %c0_49 = arith.constant 0 : index
    %93 = vector.load %arg4[%c0_45, %c3_46, %c1_47, %c0_48, %c0_49] : memref<1x5x2x16x128xf32, #tpu.memory_space<vmem>>, vector<1x1x1x16x128xf32>
    %94 = vector.shape_cast %93 : vector<1x1x1x16x128xf32> to vector<16x128xf32>
    %c0_50 = arith.constant 0 : index
    %c4_51 = arith.constant 4 : index
    %c1_52 = arith.constant 1 : index
    %c0_53 = arith.constant 0 : index
    %c0_54 = arith.constant 0 : index
    %95 = vector.load %arg4[%c0_50, %c4_51, %c1_52, %c0_53, %c0_54] : memref<1x5x2x16x128xf32, #tpu.memory_space<vmem>>, vector<1x1x1x16x128xf32>
    %96 = vector.shape_cast %95 : vector<1x1x1x16x128xf32> to vector<16x128xf32>
    %97 = arith.index_cast %arg0 : i32 to index
    %c9 = arith.constant 9 : index
    %98 = memref.load %arg3[%97, %c9] : memref<2x18xf32, #tpu.memory_space<smem>>
    %99 = arith.index_cast %arg0 : i32 to index
    %c10 = arith.constant 10 : index
    %100 = memref.load %arg3[%99, %c10] : memref<2x18xf32, #tpu.memory_space<smem>>
    %101 = arith.index_cast %arg0 : i32 to index
    %c11 = arith.constant 11 : index
    %102 = memref.load %arg3[%101, %c11] : memref<2x18xf32, #tpu.memory_space<smem>>
    %103 = arith.index_cast %arg0 : i32 to index
    %c12 = arith.constant 12 : index
    %104 = memref.load %arg3[%103, %c12] : memref<2x18xf32, #tpu.memory_space<smem>>
    %105 = arith.index_cast %arg0 : i32 to index
    %c13 = arith.constant 13 : index
    %106 = memref.load %arg3[%105, %c13] : memref<2x18xf32, #tpu.memory_space<smem>>
    %107 = arith.index_cast %arg0 : i32 to index
    %c14 = arith.constant 14 : index
    %108 = memref.load %arg3[%107, %c14] : memref<2x18xf32, #tpu.memory_space<smem>>
    %109 = arith.index_cast %arg0 : i32 to index
    %c15 = arith.constant 15 : index
    %110 = memref.load %arg3[%109, %c15] : memref<2x18xf32, #tpu.memory_space<smem>>
    %111 = arith.index_cast %arg0 : i32 to index
    %c16 = arith.constant 16 : index
    %112 = memref.load %arg3[%111, %c16] : memref<2x18xf32, #tpu.memory_space<smem>>
    %113 = arith.index_cast %arg0 : i32 to index
    %c17 = arith.constant 17 : index
    %114 = memref.load %arg3[%113, %c17] : memref<2x18xf32, #tpu.memory_space<smem>>
    %115 = vector.broadcast %98 : f32 to vector<16x128xf32>
    %116 = arith.mulf %115, %88 : vector<16x128xf32>
    %117 = vector.broadcast %100 : f32 to vector<16x128xf32>
    %118 = arith.mulf %117, %90 : vector<16x128xf32>
    %119 = arith.addf %116, %118 : vector<16x128xf32>
    %120 = vector.broadcast %102 : f32 to vector<16x128xf32>
    %121 = arith.addf %119, %120 : vector<16x128xf32>
    %122 = vector.broadcast %104 : f32 to vector<16x128xf32>
    %123 = arith.mulf %122, %88 : vector<16x128xf32>
    %124 = vector.broadcast %106 : f32 to vector<16x128xf32>
    %125 = arith.mulf %124, %90 : vector<16x128xf32>
    %126 = arith.addf %123, %125 : vector<16x128xf32>
    %127 = vector.broadcast %108 : f32 to vector<16x128xf32>
    %128 = arith.addf %126, %127 : vector<16x128xf32>
    %129 = vector.broadcast %110 : f32 to vector<16x128xf32>
    %130 = arith.mulf %129, %88 : vector<16x128xf32>
    %131 = vector.broadcast %112 : f32 to vector<16x128xf32>
    %132 = arith.mulf %131, %90 : vector<16x128xf32>
    %133 = arith.addf %130, %132 : vector<16x128xf32>
    %134 = vector.broadcast %114 : f32 to vector<16x128xf32>
    %135 = arith.addf %133, %134 : vector<16x128xf32>
    %136 = arith.mulf %92, %121 : vector<16x128xf32>
    %137 = arith.mulf %94, %128 : vector<16x128xf32>
    %138 = arith.addf %136, %137 : vector<16x128xf32>
    %139 = arith.addf %138, %135 : vector<16x128xf32>
    %140 = arith.mulf %121, %121 : vector<16x128xf32>
    %141 = arith.mulf %128, %128 : vector<16x128xf32>
    %142 = arith.addf %140, %141 : vector<16x128xf32>
    %cst_55 = arith.constant 1.000000e-16 : f32
    %143 = vector.broadcast %cst_55 : f32 to vector<16x128xf32>
    %144 = arith.maximumf %142, %143 : vector<16x128xf32>
    %145 = math.rsqrt %144 : vector<16x128xf32>
    %146 = math.absf %139 : vector<16x128xf32>
    %147 = arith.mulf %146, %145 : vector<16x128xf32>
    %148 = vector.broadcast %0 : f32 to vector<16x128xf32>
    %149 = arith.cmpf olt, %147, %148 : vector<16x128xf32>
    %cst_56 = arith.constant 1.000000e+00 : f32
    %cst_57 = arith.constant 0.000000e+00 : f32
    %150 = vector.broadcast %cst_56 : f32 to vector<16x128xf32>
    %151 = vector.broadcast %cst_57 : f32 to vector<16x128xf32>
    %152 = arith.select %149, %150, %151 : vector<16x128xi1>, vector<16x128xf32>
    %cst_58 = arith.constant 1.000000e-10 : f32
    %153 = vector.broadcast %cst_58 : f32 to vector<16x128xf32>
    %154 = arith.maximumf %96, %153 : vector<16x128xf32>
    %155 = tpu.reciprocal %154 : vector<16x128xf32> -> vector<16x128xf32>
    %156 = arith.mulf %152, %155 : vector<16x128xf32>
    %157 = arith.mulf %156, %147 : vector<16x128xf32>
    %158 = vector.extract_strided_slice %152 {offsets = [0, 0], sizes = [8, 128], strides = [1, 1]} : vector<16x128xf32> to vector<8x128xf32>
    %159 = vector.extract_strided_slice %152 {offsets = [8, 0], sizes = [8, 128], strides = [1, 1]} : vector<16x128xf32> to vector<8x128xf32>
    %160 = arith.addf %158, %159 : vector<8x128xf32>
    %161 = vector.extract_strided_slice %155 {offsets = [0, 0], sizes = [8, 128], strides = [1, 1]} : vector<16x128xf32> to vector<8x128xf32>
    %162 = vector.extract_strided_slice %155 {offsets = [8, 0], sizes = [8, 128], strides = [1, 1]} : vector<16x128xf32> to vector<8x128xf32>
    %163 = arith.addf %161, %162 : vector<8x128xf32>
    %164 = vector.extract_strided_slice %156 {offsets = [0, 0], sizes = [8, 128], strides = [1, 1]} : vector<16x128xf32> to vector<8x128xf32>
    %165 = vector.extract_strided_slice %156 {offsets = [8, 0], sizes = [8, 128], strides = [1, 1]} : vector<16x128xf32> to vector<8x128xf32>
    %166 = arith.addf %164, %165 : vector<8x128xf32>
    %167 = vector.extract_strided_slice %157 {offsets = [0, 0], sizes = [8, 128], strides = [1, 1]} : vector<16x128xf32> to vector<8x128xf32>
    %168 = vector.extract_strided_slice %157 {offsets = [8, 0], sizes = [8, 128], strides = [1, 1]} : vector<16x128xf32> to vector<8x128xf32>
    %169 = arith.addf %167, %168 : vector<8x128xf32>
    %170 = arith.addf %77, %160 : vector<8x128xf32>
    %171 = arith.addf %80, %163 : vector<8x128xf32>
    %172 = arith.addf %83, %166 : vector<8x128xf32>
    %173 = arith.addf %86, %169 : vector<8x128xf32>
    %c0_59 = arith.constant 0 : index
    %c0_60 = arith.constant 0 : index
    %c0_61 = arith.constant 0 : index
    %174 = vector.load %arg6[%c0_59, %c0_60, %c0_61] : memref<4x8x128xf32, #tpu.memory_space<vmem>>, vector<1x8x128xf32>
    %175 = vector.shape_cast %174 : vector<1x8x128xf32> to vector<8x128xf32>
    %176 = arith.addf %175, %170 : vector<8x128xf32>
    %c0_62 = arith.constant 0 : index
    %c0_63 = arith.constant 0 : index
    %c0_64 = arith.constant 0 : index
    %177 = vector.load %arg6[%c0_62, %c0_63, %c0_64] : memref<4x8x128xf32, #tpu.memory_space<vmem>>, vector<1x8x128xf32>
    %178 = vector.shape_cast %177 : vector<1x8x128xf32> to vector<8x128xf32>
    %179 = vector.shape_cast %176 : vector<8x128xf32> to vector<1x8x128xf32>
    tpu.vector_store %arg6[%c0_62, %c0_63, %c0_64], %179 {strides = array<i32>} : memref<4x8x128xf32, #tpu.memory_space<vmem>>, vector<1x8x128xf32>,
    %c1_65 = arith.constant 1 : index
    %c0_66 = arith.constant 0 : index
    %c0_67 = arith.constant 0 : index
    %180 = vector.load %arg6[%c1_65, %c0_66, %c0_67] : memref<4x8x128xf32, #tpu.memory_space<vmem>>, vector<1x8x128xf32>
    %181 = vector.shape_cast %180 : vector<1x8x128xf32> to vector<8x128xf32>
    %182 = arith.addf %181, %171 : vector<8x128xf32>
    %c1_68 = arith.constant 1 : index
    %c0_69 = arith.constant 0 : index
    %c0_70 = arith.constant 0 : index
    %183 = vector.load %arg6[%c1_68, %c0_69, %c0_70] : memref<4x8x128xf32, #tpu.memory_space<vmem>>, vector<1x8x128xf32>
    %184 = vector.shape_cast %183 : vector<1x8x128xf32> to vector<8x128xf32>
    %185 = vector.shape_cast %182 : vector<8x128xf32> to vector<1x8x128xf32>
    tpu.vector_store %arg6[%c1_68, %c0_69, %c0_70], %185 {strides = array<i32>} : memref<4x8x128xf32, #tpu.memory_space<vmem>>, vector<1x8x128xf32>,
    %c2_71 = arith.constant 2 : index
    %c0_72 = arith.constant 0 : index
    %c0_73 = arith.constant 0 : index
    %186 = vector.load %arg6[%c2_71, %c0_72, %c0_73] : memref<4x8x128xf32, #tpu.memory_space<vmem>>, vector<1x8x128xf32>
    %187 = vector.shape_cast %186 : vector<1x8x128xf32> to vector<8x128xf32>
    %188 = arith.addf %187, %172 : vector<8x128xf32>
    %c2_74 = arith.constant 2 : index
    %c0_75 = arith.constant 0 : index
    %c0_76 = arith.constant 0 : index
    %189 = vector.load %arg6[%c2_74, %c0_75, %c0_76] : memref<4x8x128xf32, #tpu.memory_space<vmem>>, vector<1x8x128xf32>
    %190 = vector.shape_cast %189 : vector<1x8x128xf32> to vector<8x128xf32>
    %191 = vector.shape_cast %188 : vector<8x128xf32> to vector<1x8x128xf32>
    tpu.vector_store %arg6[%c2_74, %c0_75, %c0_76], %191 {strides = array<i32>} : memref<4x8x128xf32, #tpu.memory_space<vmem>>, vector<1x8x128xf32>,
    %c3_77 = arith.constant 3 : index
    %c0_78 = arith.constant 0 : index
    %c0_79 = arith.constant 0 : index
    %192 = vector.load %arg6[%c3_77, %c0_78, %c0_79] : memref<4x8x128xf32, #tpu.memory_space<vmem>>, vector<1x8x128xf32>
    %193 = vector.shape_cast %192 : vector<1x8x128xf32> to vector<8x128xf32>
    %194 = arith.addf %193, %173 : vector<8x128xf32>
    %c3_80 = arith.constant 3 : index
    %c0_81 = arith.constant 0 : index
    %c0_82 = arith.constant 0 : index
    %195 = vector.load %arg6[%c3_80, %c0_81, %c0_82] : memref<4x8x128xf32, #tpu.memory_space<vmem>>, vector<1x8x128xf32>
    %196 = vector.shape_cast %195 : vector<1x8x128xf32> to vector<8x128xf32>
    %197 = vector.shape_cast %194 : vector<8x128xf32> to vector<1x8x128xf32>
    tpu.vector_store %arg6[%c3_80, %c0_81, %c0_82], %197 {strides = array<i32>} : memref<4x8x128xf32, #tpu.memory_space<vmem>>, vector<1x8x128xf32>,
    %c0_i32_83 = arith.constant 0 : i32
    %198 = arith.cmpi eq, %arg1, %c0_i32_83 : i32
    %199 = arith.extui %198 : i1 to i32
    %c0_i32_84 = arith.constant 0 : i32
    %200 = arith.cmpi ne, %199, %c0_i32_84 : i32
    scf.if %200 {
      %c0_85 = arith.constant 0 : index
      %c0_86 = arith.constant 0 : index
      %c0_87 = arith.constant 0 : index
      %201 = vector.load %arg6[%c0_85, %c0_86, %c0_87] : memref<4x8x128xf32, #tpu.memory_space<vmem>>, vector<1x8x128xf32>
      %202 = vector.shape_cast %201 : vector<1x8x128xf32> to vector<8x128xf32>
      %203 = vector.shape_cast %202 : vector<8x128xf32> to vector<1x8x128xf32>
      %cst_88 = arith.constant dense<0.000000e+00> : vector<1xf32>
      %204 = vector.multi_reduction <add>, %203, %cst_88 [1, 2] : vector<1x8x128xf32> to vector<1xf32>
      %205 = vector.shape_cast %204 : vector<1xf32> to vector<1x1x1xf32>
      %206 = vector.extract %205[0, 0, 0] : f32 from vector<1x1x1xf32>
      %c1_89 = arith.constant 1 : index
      %c0_90 = arith.constant 0 : index
      %c0_91 = arith.constant 0 : index
      %207 = vector.load %arg6[%c1_89, %c0_90, %c0_91] : memref<4x8x128xf32, #tpu.memory_space<vmem>>, vector<1x8x128xf32>
      %208 = vector.shape_cast %207 : vector<1x8x128xf32> to vector<8x128xf32>
      %209 = vector.shape_cast %208 : vector<8x128xf32> to vector<1x8x128xf32>
      %cst_92 = arith.constant dense<0.000000e+00> : vector<1xf32>
      %210 = vector.multi_reduction <add>, %209, %cst_92 [1, 2] : vector<1x8x128xf32> to vector<1xf32>
      %211 = vector.shape_cast %210 : vector<1xf32> to vector<1x1x1xf32>
      %212 = vector.extract %211[0, 0, 0] : f32 from vector<1x1x1xf32>
      %c2_93 = arith.constant 2 : index
      %c0_94 = arith.constant 0 : index
      %c0_95 = arith.constant 0 : index
      %213 = vector.load %arg6[%c2_93, %c0_94, %c0_95] : memref<4x8x128xf32, #tpu.memory_space<vmem>>, vector<1x8x128xf32>
      %214 = vector.shape_cast %213 : vector<1x8x128xf32> to vector<8x128xf32>
      %215 = vector.shape_cast %214 : vector<8x128xf32> to vector<1x8x128xf32>
      %cst_96 = arith.constant dense<0.000000e+00> : vector<1xf32>
      %216 = vector.multi_reduction <add>, %215, %cst_96 [1, 2] : vector<1x8x128xf32> to vector<1xf32>
      %217 = vector.shape_cast %216 : vector<1xf32> to vector<1x1x1xf32>
      %218 = vector.extract %217[0, 0, 0] : f32 from vector<1x1x1xf32>
      %c3_97 = arith.constant 3 : index
      %c0_98 = arith.constant 0 : index
      %c0_99 = arith.constant 0 : index
      %219 = vector.load %arg6[%c3_97, %c0_98, %c0_99] : memref<4x8x128xf32, #tpu.memory_space<vmem>>, vector<1x8x128xf32>
      %220 = vector.shape_cast %219 : vector<1x8x128xf32> to vector<8x128xf32>
      %221 = vector.shape_cast %220 : vector<8x128xf32> to vector<1x8x128xf32>
      %cst_100 = arith.constant dense<0.000000e+00> : vector<1xf32>
      %222 = vector.multi_reduction <add>, %221, %cst_100 [1, 2] : vector<1x8x128xf32> to vector<1xf32>
      %223 = vector.shape_cast %222 : vector<1xf32> to vector<1x1x1xf32>
      %224 = vector.extract %223[0, 0, 0] : f32 from vector<1x1x1xf32>
      %cst_101 = arith.constant 9.99999993E-9 : f32
      %225 = arith.mulf %cst_101, %212 : f32
      %226 = arith.addf %218, %225 : f32
      %227 = arith.divf %224, %226 : f32
      %cst_102 = arith.constant 2.44140625E-4 : f32
      %228 = arith.mulf %206, %cst_102 : f32
      %229 = tpu.iota {dimensions = array<i32: 0>} : vector<8x128xi32>
      %c0_i32_103 = arith.constant 0 : i32
      %230 = vector.broadcast %c0_i32_103 : i32 to vector<8x128xi32>
      %231 = arith.cmpi eq, %229, %230 : vector<8x128xi32>
      %c1_i32 = arith.constant 1 : i32
      %232 = vector.broadcast %c1_i32 : i32 to vector<8x128xi32>
      %233 = arith.cmpi eq, %229, %232 : vector<8x128xi32>
      %cst_104 = arith.constant 0.000000e+00 : f32
      %234 = vector.broadcast %228 : f32 to vector<8x128xf32>
      %235 = vector.broadcast %cst_104 : f32 to vector<8x128xf32>
      %236 = arith.select %233, %234, %235 : vector<8x128xi1>, vector<8x128xf32>
      %237 = vector.broadcast %227 : f32 to vector<8x128xf32>
      %238 = arith.select %231, %237, %236 : vector<8x128xi1>, vector<8x128xf32>
      %c0_105 = arith.constant 0 : index
      %c0_106 = arith.constant 0 : index
      %c0_107 = arith.constant 0 : index
      %239 = vector.load %arg5[%c0_105, %c0_106, %c0_107] : memref<1x8x128xf32, #tpu.memory_space<vmem>>, vector<1x8x128xf32>
      %240 = vector.shape_cast %239 : vector<1x8x128xf32> to vector<8x128xf32>
      %241 = vector.shape_cast %238 : vector<8x128xf32> to vector<1x8x128xf32>
      tpu.vector_store %arg5[%c0_105, %c0_106, %c0_107], %241 {strides = array<i32>} : memref<1x8x128xf32, #tpu.memory_space<vmem>>, vector<1x8x128xf32>,
    } else {
    }
    return
  }
  func.func @transform_0(%arg0: i32, %arg1: i32, %arg2: memref<1xf32, #tpu.memory_space<smem>>, %arg3: memref<2x18xf32, #tpu.memory_space<smem>>) -> (i32, i32, i32, i32, i32) {
    %c0_i32 = arith.constant 0 : i32
    %c0_i32_0 = arith.constant 0 : i32
    %c0_i32_1 = arith.constant 0 : i32
    %c0_i32_2 = arith.constant 0 : i32
    return %arg0, %c0_i32, %c0_i32_0, %arg1, %c0_i32_1 : i32, i32, i32, i32, i32
  }
  func.func @transform_1(%arg0: i32, %arg1: i32, %arg2: memref<1xf32, #tpu.memory_space<smem>>, %arg3: memref<2x18xf32, #tpu.memory_space<smem>>) -> (i32, i32, i32) {
    %c0_i32 = arith.constant 0 : i32
    %c0_i32_0 = arith.constant 0 : i32
    %c0_i32_1 = arith.constant 0 : i32
    return %arg0, %c0_i32, %c0_i32_0 : i32, i32, i32
  }
}

</mosaic_0001>

<llo_original>
// kernel: _epipolar_pallas.1
$region0: #{_epipolar_pallas.1}
  #allocation0 [shape = 'u32[]', space=smem, size = 0x4, offset = 0x4, fixed_abs, tag = 'smem constant byte address 0x4 - core index']
  #allocation1 [shape = 'u32[144,128]{1,0:T(1,128)}', space=vmem, size = 0x12000, scoped, tag = 'internal scratch']
  #allocation2 [shape = 'f32[4,8,128]{2,1,0:T(8,128)}', space=vmem, size = 0x4000, scoped, tag = 'scratch operand']
  #allocation3 [shape = 's32[1]{0}', space=sflag, size = 0x4, scoped, tag = 'scoped memory for _epipolar_pallas.1']
  #allocation4 [shape = 'f32[1]{0:T(128)S(6)}', space=smem, size = 0x200, scoped, tag = 'prefetched SMEM operand 0']
  #allocation5 [shape = 'u8[1024]{0}', space=smem, size = 0x400, scoped, tag = 'prefetched SMEM operand 1']
  %s0 = inlined_call_operand.<no memory space> [shape: f32[1], index: 0, kind: input, shape index: {}]
  %s1 = inlined_call_operand.vmem [shape: f32[2,18], index: 1, kind: input, shape index: {}]
  %s2 = inlined_call_operand.vmem [shape: f32[2,5,2,16,128], index: 2, kind: input, shape index: {}]
  %s3 = inlined_call_operand.hbm [shape: f32[2,8,128], index: 3, kind: output, shape index: {}]
  %s4 = sld [smem:[#allocation0]]
  $region45: #{_epipolar_pallas.1} parent=0
    _
  %s6 = ssub.s32 1, %s4
  %s7 = scalar_select 0, %s6, %s4
  %8 = sst [smem:[#allocation4]] %s0
  %s9 = sshll.u32 %s1, 4
  %s10 = int_to_ptr.vmem [resolvable:$true] %s9
  %12 = dma.vmem_to_smem %s10, 32, [#allocation5], [#allocation3]
  %13 = dma.done [#allocation3], 32
  %14 = sfence
  $region1: #{_epipolar_pallas.1} parent=0
    #allocation6 [shape = 'u8[8192]{0}', space=vmem, size = 0x2000, scoped, tag = 'output window, operand 0']
    #allocation7 [shape = 's32[2]{0}', space=sflag, size = 0x8, scoped, tag = 'scoped memory for _epipolar_pallas.1']
    %15 = vsyncpa [#allocation7], 0
    %s16 = scalar_lea.sflag [#allocation7], 1
    %17 = vsyncpa %s16, 0
    loop: start=0, step=1, limit=4
    $region2: #{_epipolar_pallas.1} parent=1 // loop_pre_header
      _
    $region3: #{_epipolar_pallas.1} parent=1 // loop_header
      %s19 = sphi 0, %s23
      %p20 = scmp.ge.s32.totalorder %s19, 4
      %s26 = sphi 0, %s38
      %s27 = sphi 0, %s34
      %s28 = sphi 0, %s26
      %s29 = sphi 0, %s27
      %s30 = sphi 0, %s28
      %s31 = sphi 0, %s29
      %s43 = sphi 0, %s45
      %s46 = sphi 0, %s43
      %s47 = sphi 0, %s46
      %s63 = sphi 0, %s47
      %s69 = sphi 0, %s71
      %s72 = sphi 0, %s69
      %s73 = sphi 0, %s72
      %s89 = sphi 0, %s73
    $region4: #{_epipolar_pallas.1} parent=1 // loop_header_branch
      %22 = sbr.rel (%p20) target = $region8
    $region5: #{_epipolar_pallas.1} parent=1 // loop_body
      %s24 = ssub.s32 %s19, 1
      %s25 = ssub.s32 %s19, 2
      %s32 = sadd.s32 1, %s27
      %p33 = scmp.ge.s32.totalorder %s32, 1
      %s34 = scalar_select %p33, 0, %s32
      %s35 = sadd.s32 1, %s26
      %s36 = scalar_select %p33, %s35, %s26
      %p37 = scmp.ge.s32.totalorder %s36, 2
      %s38 = scalar_select %p37, 0, %s36
      %s39 = ssub.s32 %s26, %s38
      %s40 = ssub.s32 %s27, %s34
      %s41 = sor.u32 %s39, %s40
      %p42 = scmp.eq.s32.totalorder %s41, 0
      %s44 = sadd.s32 %s43, 1
      %s45 = scalar_select %p42, %s43, %s44
      %p48 = pneg %p42
      %p49 = scmp.eq.s32.totalorder %s19, 1
      %p50 = por %p48, %p49
      %p51 = scmp.ne.s32.totalorder %s43, %s46
      %p52 = scmp.eq.s32.totalorder %s19, 0
      %p53 = por %p51, %p52
      %p54 = scmp.ne.s32.totalorder %s43, %s46
      %p55 = scmp.eq.s32.totalorder %s24, 1
      %p56 = por %p54, %p55
      %p57 = scmp.ne.s32.totalorder %s46, %s47
      %p58 = scmp.eq.s32.totalorder %s24, 0
      %p59 = por %p57, %p58
      %p60 = scmp.ne.s32.totalorder %s46, %s47
      %p61 = scmp.eq.s32.totalorder %s25, 1
      %p62 = por %p60, %p61
      %p64 = scmp.ne.s32.totalorder %s47, %s63
      %p65 = scmp.eq.s32.totalorder %s25, 0
      %p66 = por %p64, %p65
      %s67 = ssub.s32 %s26, %s38
      %p68 = scmp.eq.s32.totalorder %s67, 0
      %s70 = sadd.s32 %s69, 1
      %s71 = scalar_select %p68, %s69, %s70
      %p74 = pneg %p68
      %p75 = scmp.eq.s32.totalorder %s19, 1
      %p76 = por %p74, %p75
      %p77 = scmp.ne.s32.totalorder %s69, %s72
      %p78 = scmp.eq.s32.totalorder %s19, 0
      %p79 = por %p77, %p78
      %p80 = scmp.ne.s32.totalorder %s69, %s72
      %p81 = scmp.eq.s32.totalorder %s24, 1
      %p82 = por %p80, %p81
      %p83 = scmp.ne.s32.totalorder %s72, %s73
      %p84 = scmp.eq.s32.totalorder %s24, 0
      %p85 = por %p83, %p84
      %p86 = scmp.ne.s32.totalorder %s72, %s73
      %p87 = scmp.eq.s32.totalorder %s25, 1
      %p88 = por %p86, %p87
      %p90 = scmp.ne.s32.totalorder %s73, %s89
      %p91 = scmp.eq.s32.totalorder %s25, 0
      %p92 = por %p90, %p91
      %p93 = scmp.le.s32.totalorder 1, %s19
      %p94 = scmp.lt.s32.totalorder %s19, 3
      %p95 = pnand %p93, %p94
      %p96 = pneg %p95
      // Predicated region
      $region9: #{_epipolar_pallas.1} parent=5 // pred_check
        _
      $region10: #{_epipolar_pallas.1} parent=5 // pred_check_branch
        %98 = sbr.rel (%p95) target = $region12
      $region11: #{_epipolar_pallas.1} parent=5 // pred_region
        %s99 = ssub.s32 %s19, 1
      $region12: #{_epipolar_pallas.1} parent=5 // pred_fallthru
        _
      %p100 = scmp.lt.s32.totalorder %s19, 2
      // Predicated region
      $region13: #{_epipolar_pallas.1} parent=5 // pred_check
        %p101 = pneg %p100
      $region14: #{_epipolar_pallas.1} parent=5 // pred_check_branch
        %103 = sbr.rel (%p101) target = $region16
      $region15: #{_epipolar_pallas.1} parent=5 // pred_region
        // Predicated region
        $region17: #{_epipolar_pallas.1} parent=15 // pred_check
          %p104 = pneg %p53
        $region18: #{_epipolar_pallas.1} parent=15 // pred_check_branch
          %106 = sbr.rel (%p104) target = $region20
        $region19: #{_epipolar_pallas.1} parent=15 // pred_region
          %s107 = smul.u32 2, %s27
          %p108 = scmp.lt.s32.totalorder %s26, 1
          %s109 = scalar_select %p108, %s26, 1
          %p110 = scmp.lt.s32.totalorder %s107, 1
          %s111 = scalar_select %p110, %s107, 1
          %s112 = smul.addr %s109, 20
          %s113 = sadd.s32 %s111, %s112
          %s114 = smul.addr %s113, 8
          %s115 = scalar_lea.vmem %s2, %s114
          %s116 = smul.u32 2, %s27
        $region20: #{_epipolar_pallas.1} parent=15 // pred_fallthru
          _
      $region16: #{_epipolar_pallas.1} parent=5 // pred_fallthru
        _
      %p117 = scmp.le.s32.totalorder 1, %s19
      %p118 = scmp.lt.s32.totalorder %s19, 3
      %p119 = pnand %p117, %p118
      %p120 = pneg %p119
      // Predicated region
      $region21: #{_epipolar_pallas.1} parent=5 // pred_check
        _
      $region22: #{_epipolar_pallas.1} parent=5 // pred_check_branch
        %122 = sbr.rel (%p119) target = $region24
      $region23: #{_epipolar_pallas.1} parent=5 // pred_region
        %s123 = ssub.s32 %s19, 1
        %s124 = smul.u32 2, %s29
        %p125 = scmp.lt.s32.totalorder %s28, 1
        %s126 = scalar_select %p125, %s28, 1
        %p127 = scmp.lt.s32.totalorder %s124, 1
        %s128 = scalar_select %p127, %s124, 1
        %s129 = smul.addr %s126, 20
        %s130 = sadd.s32 %s128, %s129
        %s131 = smul.addr %s130, 8
        %s132 = scalar_lea.vmem %s2, %s131
        %p133 = pneg %p59
        %p134 = pneg %p56
        %p135 = pneg %p85
        %p136 = pneg %p82
        %s137 = sand.u32 %s72, 1
        %s138 = scalar_lea.sflag [#allocation7], %s137
        %s139 = sand.u32 %s72, 1
        %s140 = smul.addr %s139, 8
        %s141 = scalar_lea.vmem [#allocation6], %s140
        %s142 = smul.u32 2, %s29
        %p143 = scmp.lt.s32.totalorder %s28, 1
        %s144 = scalar_select %p143, %s28, 1
        %p145 = scmp.lt.s32.totalorder %s142, 1
        %s146 = scalar_select %p145, %s142, 1
        %s147 = smul.addr %s144, 20
        %s148 = sadd.s32 %s146, %s147
        %s149 = smul.addr %s148, 8
        %s150 = scalar_lea.vmem %s2, %s149
        %s151 = smul.u32 2, %s29
        %s152 = sld [smem:[#allocation4]]
        %p153 = scmp.eq.s32.totalorder %s29, 0
        // Predicated region
        $region25: #{_epipolar_pallas.1} parent=23 // pred_check
          %p154 = pneg %p153
        $region26: #{_epipolar_pallas.1} parent=23 // pred_check_branch
          %156 = sbr.rel (%p154) target = $region28
        $region27: #{_epipolar_pallas.1} parent=23 // pred_region
          %157 = vst [vmem:[#allocation2] sm:$0xff] 0.0
          %158 = vst [vmem:[#allocation2 + $0x8] sm:$0xff] 0.0
          %159 = vst [vmem:[#allocation2 + $0x10] sm:$0xff] 0.0
          %160 = vst [vmem:[#allocation2 + $0x18] sm:$0xff] 0.0
        $region28: #{_epipolar_pallas.1} parent=23 // pred_fallthru
          _
        %v161 = vld [vmem:[%s150] sm:$0xff]
        %v162 = vld [vmem:[%s150 + $0x8] sm:$0xff]
        %s163 = scalar_lea.vmem %s150, 32
        %v164 = vld [vmem:[%s163] sm:$0xff]
        %v165 = vld [vmem:[%s163 + $0x8] sm:$0xff]
        %s166 = scalar_lea.vmem %s150, 64
        %v167 = vld [vmem:[%s166] sm:$0xff]
        %v168 = vld [vmem:[%s166 + $0x8] sm:$0xff]
        %s169 = scalar_lea.vmem %s150, 96
        %v170 = vld [vmem:[%s169] sm:$0xff]
        %v171 = vld [vmem:[%s169 + $0x8] sm:$0xff]
        %s172 = scalar_lea.vmem %s150, 128
        %v173 = vld [vmem:[%s172] sm:$0xff]
        %v174 = vld [vmem:[%s172 + $0x8] sm:$0xff]
        %s175 = smul.u32 %s28, 128
        %s176 = sld [smem:[#allocation5 + %s175]]
        %s177 = sadd.s32 %s175, 1
        %s178 = sld [smem:[#allocation5 + %s177]]
        %s179 = sadd.s32 %s175, 2
        %s180 = sld [smem:[#allocation5 + %s179]]
        %s181 = sadd.s32 %s175, 3
        %s182 = sld [smem:[#allocation5 + %s181]]
        %s183 = sadd.s32 %s175, 4
        %s184 = sld [smem:[#allocation5 + %s183]]
        %s185 = sadd.s32 %s175, 5
        %s186 = sld [smem:[#allocation5 + %s185]]
        %s187 = sadd.s32 %s175, 6
        %s188 = sld [smem:[#allocation5 + %s187]]
        %s189 = sadd.s32 %s175, 7
        %s190 = sld [smem:[#allocation5 + %s189]]
        %s191 = sadd.s32 %s175, 8
        %s192 = sld [smem:[#allocation5 + %s191]]
        %v193 = vstv %s176
        %v194 = vmul.f32 %v193, %v161
        %v195 = vmul.f32 %v193, %v162
        %v196 = vstv %s178
        %v197 = vmul.f32 %v196, %v164
        %v198 = vmul.f32 %v196, %v165
        %v199 = vadd.f32 %v194, %v197
        %v200 = vadd.f32 %v195, %v198
        %v201 = vstv %s180
        %v202 = vadd.f32 %v199, %v201
        %v203 = vadd.f32 %v200, %v201
        %v204 = vstv %s182
        %v205 = vmul.f32 %v204, %v161
        %v206 = vmul.f32 %v204, %v162
        %v207 = vstv %s184
        %v208 = vmul.f32 %v207, %v164
        %v209 = vmul.f32 %v207, %v165
        %v210 = vadd.f32 %v205, %v208
        %v211 = vadd.f32 %v206, %v209
        %v212 = vstv %s186
        %v213 = vadd.f32 %v210, %v212
        %v214 = vadd.f32 %v211, %v212
        %v215 = vstv %s188
        %v216 = vmul.f32 %v215, %v161
        %v217 = vmul.f32 %v215, %v162
        %v218 = vstv %s190
        %v219 = vmul.f32 %v218, %v164
        %v220 = vmul.f32 %v218, %v165
        %v221 = vadd.f32 %v216, %v219
        %v222 = vadd.f32 %v217, %v220
        %v223 = vstv %s192
        %v224 = vadd.f32 %v221, %v223
        %v225 = vadd.f32 %v222, %v223
        %v226 = vmul.f32 %v167, %v202
        %v227 = vmul.f32 %v168, %v203
        %v228 = vmul.f32 %v170, %v213
        %v229 = vmul.f32 %v171, %v214
        %v230 = vadd.f32 %v226, %v228
        %v231 = vadd.f32 %v227, %v229
        %v232 = vadd.f32 %v230, %v224
        %v233 = vadd.f32 %v231, %v225
        %v234 = vmul.f32 %v202, %v202
        %v235 = vmul.f32 %v203, %v203
        %v236 = vmul.f32 %v213, %v213
        %v237 = vmul.f32 %v214, %v214
        %v238 = vadd.f32 %v234, %v236
        %v239 = vadd.f32 %v235, %v237
        %v240 = vmax.f32 %v238, 1e-16
        %v241 = vmax.f32 %v239, 1e-16
        %v242 = vrsqrt.pop %v240
        %v243 = vrsqrt.pop %v241
        %v244 = vand.u32 2147483647, %v232
        %v245 = vand.u32 2147483647, %v233
        %v246 = vmul.f32 %v244, %v242
        %v247 = vmul.f32 %v245, %v243
        %v248 = vstv %s152
        %vm249 = vcmp.lt.f32.partialorder %v246, %v248
        %vm250 = vcmp.lt.f32.partialorder %v247, %v248
        %v251 = vsel %vm249, 1.0, 0.0
        %v252 = vsel %vm250, 1.0, 0.0
        %v253 = vmax.f32 %v173, 1e-10
        %v254 = vmax.f32 %v174, 1e-10
        %v255 = vrcp.pop %v253
        %v256 = vrcp.pop %v254
        %v257 = vmul.f32 %v251, %v255
        %v258 = vmul.f32 %v252, %v256
        %v259 = vmul.f32 %v257, %v246
        %v260 = vmul.f32 %v258, %v247
        %v261 = vadd.f32 %v251, %v252
        %v262 = vadd.f32 %v255, %v256
        %v263 = vadd.f32 %v257, %v258
        %v264 = vadd.f32 %v259, %v260
        %s265 = scalar_lea.vmem %s150, 16
        %v266 = vld [vmem:[%s265] sm:$0xff]
        %v267 = vld [vmem:[%s265 + $0x8] sm:$0xff]
        %s268 = scalar_lea.vmem %s150, 48
        %v269 = vld [vmem:[%s268] sm:$0xff]
        %v270 = vld [vmem:[%s268 + $0x8] sm:$0xff]
        %s271 = scalar_lea.vmem %s150, 80
        %v272 = vld [vmem:[%s271] sm:$0xff]
        %v273 = vld [vmem:[%s271 + $0x8] sm:$0xff]
        %s274 = scalar_lea.vmem %s150, 112
        %v275 = vld [vmem:[%s274] sm:$0xff]
        %v276 = vld [vmem:[%s274 + $0x8] sm:$0xff]
        %s277 = scalar_lea.vmem %s150, 144
        %v278 = vld [vmem:[%s277] sm:$0xff]
        %v279 = vld [vmem:[%s277 + $0x8] sm:$0xff]
        %s280 = sadd.s32 %s175, 9
        %s281 = sld [smem:[#allocation5 + %s280]]
        %s282 = sadd.s32 %s175, 10
        %s283 = sld [smem:[#allocation5 + %s282]]
        %s284 = sadd.s32 %s175, 11
        %s285 = sld [smem:[#allocation5 + %s284]]
        %s286 = sadd.s32 %s175, 12
        %s287 = sld [smem:[#allocation5 + %s286]]
        %s288 = sadd.s32 %s175, 13
        %s289 = sld [smem:[#allocation5 + %s288]]
        %s290 = sadd.s32 %s175, 14
        %s291 = sld [smem:[#allocation5 + %s290]]
        %s292 = sadd.s32 %s175, 15
        %s293 = sld [smem:[#allocation5 + %s292]]
        %s294 = sadd.s32 %s175, 16
        %s295 = sld [smem:[#allocation5 + %s294]]
        %s296 = sadd.s32 %s175, 17
        %s297 = sld [smem:[#allocation5 + %s296]]
        %v298 = vstv %s281
        %v299 = vmul.f32 %v298, %v266
        %v300 = vmul.f32 %v298, %v267
        %v301 = vstv %s283
        %v302 = vmul.f32 %v301, %v269
        %v303 = vmul.f32 %v301, %v270
        %v304 = vadd.f32 %v299, %v302
        %v305 = vadd.f32 %v300, %v303
        %v306 = vstv %s285
        %v307 = vadd.f32 %v304, %v306
        %v308 = vadd.f32 %v305, %v306
        %v309 = vstv %s287
        %v310 = vmul.f32 %v309, %v266
        %v311 = vmul.f32 %v309, %v267
        %v312 = vstv %s289
        %v313 = vmul.f32 %v312, %v269
        %v314 = vmul.f32 %v312, %v270
        %v315 = vadd.f32 %v310, %v313
        %v316 = vadd.f32 %v311, %v314
        %v317 = vstv %s291
        %v318 = vadd.f32 %v315, %v317
        %v319 = vadd.f32 %v316, %v317
        %v320 = vstv %s293
        %v321 = vmul.f32 %v320, %v266
        %v322 = vmul.f32 %v320, %v267
        %v323 = vstv %s295
        %v324 = vmul.f32 %v323, %v269
        %v325 = vmul.f32 %v323, %v270
        %v326 = vadd.f32 %v321, %v324
        %v327 = vadd.f32 %v322, %v325
        %v328 = vstv %s297
        %v329 = vadd.f32 %v326, %v328
        %v330 = vadd.f32 %v327, %v328
        %v331 = vmul.f32 %v272, %v307
        %v332 = vmul.f32 %v273, %v308
        %v333 = vmul.f32 %v275, %v318
        %v334 = vmul.f32 %v276, %v319
        %v335 = vadd.f32 %v331, %v333
        %v336 = vadd.f32 %v332, %v334
        %v337 = vadd.f32 %v335, %v329
        %v338 = vadd.f32 %v336, %v330
        %v339 = vmul.f32 %v307, %v307
        %v340 = vmul.f32 %v308, %v308
        %v341 = vmul.f32 %v318, %v318
        %v342 = vmul.f32 %v319, %v319
        %v343 = vadd.f32 %v339, %v341
        %v344 = vadd.f32 %v340, %v342
        %v345 = vmax.f32 %v343, 1e-16
        %v346 = vmax.f32 %v344, 1e-16
        %v347 = vrsqrt.pop %v345
        %v348 = vrsqrt.pop %v346
        %v349 = vand.u32 2147483647, %v337
        %v350 = vand.u32 2147483647, %v338
        %v351 = vmul.f32 %v349, %v347
        %v352 = vmul.f32 %v350, %v348
        %vm353 = vcmp.lt.f32.partialorder %v351, %v248
        %vm354 = vcmp.lt.f32.partialorder %v352, %v248
        %v355 = vsel %vm353, 1.0, 0.0
        %v356 = vsel %vm354, 1.0, 0.0
        %v357 = vmax.f32 %v278, 1e-10
        %v358 = vmax.f32 %v279, 1e-10
        %v359 = vrcp.pop %v357
        %v360 = vrcp.pop %v358
        %v361 = vmul.f32 %v355, %v359
        %v362 = vmul.f32 %v356, %v360
        %v363 = vmul.f32 %v361, %v351
        %v364 = vmul.f32 %v362, %v352
        %v365 = vadd.f32 %v355, %v356
        %v366 = vadd.f32 %v359, %v360
        %v367 = vadd.f32 %v361, %v362
        %v368 = vadd.f32 %v363, %v364
        %v369 = vadd.f32 %v261, %v365
        %v370 = vadd.f32 %v262, %v366
        %v371 = vadd.f32 %v263, %v367
        %v372 = vadd.f32 %v264, %v368
        %v373 = vld [vmem:[#allocation2] sm:$0xff]
        %v374 = vadd.f32 %v373, %v369
        %375 = vst [vmem:[#allocation2] sm:$0xff] %v374
        %s376 = scalar_lea.vmem [#allocation2], 8
        %v377 = vld [vmem:[%s376] sm:$0xff]
        %v378 = vadd.f32 %v377, %v370
        %379 = vst [vmem:[%s376] sm:$0xff] %v378
        %s380 = scalar_lea.vmem [#allocation2], 16
        %v381 = vld [vmem:[%s380] sm:$0xff]
        %v382 = vadd.f32 %v381, %v371
        %383 = vst [vmem:[%s380] sm:$0xff] %v382
        %s384 = scalar_lea.vmem [#allocation2], 24
        %v385 = vld [vmem:[%s384] sm:$0xff]
        %v386 = vadd.f32 %v385, %v372
        %387 = vst [vmem:[%s384] sm:$0xff] %v386
        // Predicated region
        $region29: #{_epipolar_pallas.1} parent=23 // pred_check
          %p388 = pneg %p153
        $region30: #{_epipolar_pallas.1} parent=23 // pred_check_branch
          %390 = sbr.rel (%p388) target = $region32
        $region31: #{_epipolar_pallas.1} parent=23 // pred_region
          %v391 = vld [vmem:[#allocation2] sm:$0xff]
          %392 = vadd.xlane.f32.xlu0 %v391
          %v393 = vpop.xlane.xlu0 %392
          %v394 = vrot.slane %v393, 4
          %v395 = vadd.f32 %v393, %v394
          %v396 = vrot.slane %v395, 2
          %v397 = vadd.f32 %v395, %v396
          %v398 = vrot.slane %v397, 1
          %v399 = vadd.f32 %v397, %v398
          %s400 = vtos %v399
          %v401 = vld [vmem:[%s376] sm:$0xff]
          %402 = vadd.xlane.f32.xlu0 %v401
          %v403 = vpop.xlane.xlu0 %402
          %v404 = vrot.slane %v403, 4
          %v405 = vadd.f32 %v403, %v404
          %v406 = vrot.slane %v405, 2
          %v407 = vadd.f32 %v405, %v406
          %v408 = vrot.slane %v407, 1
          %v409 = vadd.f32 %v407, %v408
          %s410 = vtos %v409
          %v411 = vld [vmem:[%s380] sm:$0xff]
          %412 = vadd.xlane.f32.xlu0 %v411
          %v413 = vpop.xlane.xlu0 %412
          %v414 = vrot.slane %v413, 4
          %v415 = vadd.f32 %v413, %v414
          %v416 = vrot.slane %v415, 2
          %v417 = vadd.f32 %v415, %v416
          %v418 = vrot.slane %v417, 1
          %v419 = vadd.f32 %v417, %v418
          %s420 = vtos %v419
          %v421 = vld [vmem:[%s384] sm:$0xff]
          %422 = vadd.xlane.f32.xlu0 %v421
          %v423 = vpop.xlane.xlu0 %422
          %v424 = vrot.slane %v423, 4
          %v425 = vadd.f32 %v423, %v424
          %v426 = vrot.slane %v425, 2
          %v427 = vadd.f32 %v425, %v426
          %v428 = vrot.slane %v427, 1
          %v429 = vadd.f32 %v427, %v428
          %s430 = vtos %v429
          %s431 = smul.f32 %s410, 1e-08
          %s432 = sadd.f32 %s420, %s431
          %v433 = vstv %s432
          %v434 = vrcp.pop %v433
          %s435 = vtos %v434
          %s436 = smul.f32 %s430, %s435
          %s437 = smul.f32 %s400, 0.00024414063
          %v438 = vlaneseq
          %v439 = vshrl.u32 %v438, 7
          %vm440 = vcmp.eq.s32.totalorder %v439, 0
          %vm441 = vcmp.eq.s32.totalorder %v439, 1
          %v442 = vstv %s437
          %v443 = vsel %vm441, %v442, 0.0
          %v444 = vstv %s436
          %v445 = vsel %vm440, %v444, %v443
          %446 = vst [vmem:[%s141] sm:$0xff] %v445
        $region32: #{_epipolar_pallas.1} parent=23 // pred_fallthru
          _
        %s447 = sand.u32 %s72, 1
        %s448 = scalar_lea.sflag [#allocation7], %s447
        %s449 = sand.u32 %s72, 1
        %s450 = smul.addr %s449, 8
        %s451 = scalar_lea.vmem [#allocation6], %s450
        // Predicated region
        $region33: #{_epipolar_pallas.1} parent=23 // pred_check
          %p452 = pneg %p82
        $region34: #{_epipolar_pallas.1} parent=23 // pred_check_branch
          %454 = sbr.rel (%p452) target = $region36
        $region35: #{_epipolar_pallas.1} parent=23 // pred_region
          %s456 = ssub.s32 128, 128
          %457 = vsyncadd %s448, %s456
          %s458 = smul.addr %s28, 128
          %s459 = scalar_lea.hbm %s3, %s458
          %s461 = sshll.u32 %s451, 4
          %s462 = int_to_ptr.vmem [resolvable:$true] %s461
          %464 = dma.vmem_to_hbm [thread:$0]  %s462, 128, %s459, %s448
        $region36: #{_epipolar_pallas.1} parent=23 // pred_fallthru
          _
      $region24: #{_epipolar_pallas.1} parent=5 // pred_fallthru
        _
      %p465 = scmp.le.s32.totalorder 2, %s19
      // Predicated region
      $region37: #{_epipolar_pallas.1} parent=5 // pred_check
        %p466 = pneg %p465
      $region38: #{_epipolar_pallas.1} parent=5 // pred_check_branch
        %468 = sbr.rel (%p466) target = $region40
      $region39: #{_epipolar_pallas.1} parent=5 // pred_region
        %s469 = ssub.s32 %s19, 2
        // Predicated region
        $region41: #{_epipolar_pallas.1} parent=39 // pred_check
          %p470 = pneg %p88
        $region42: #{_epipolar_pallas.1} parent=39 // pred_check_branch
          %472 = sbr.rel (%p470) target = $region44
        $region43: #{_epipolar_pallas.1} parent=39 // pred_region
          %s473 = sand.u32 %s73, 1
          %s474 = scalar_lea.sflag [#allocation7], %s473
          %s475 = sand.u32 %s73, 1
          %s476 = smul.addr %s475, 8
          %s477 = scalar_lea.vmem [#allocation6], %s476
          %478 = dma.done %s474, 128
        $region44: #{_epipolar_pallas.1} parent=39 // pred_fallthru
          _
      $region40: #{_epipolar_pallas.1} parent=5 // pred_fallthru
        _
    $region6: #{_epipolar_pallas.1} parent=1 // loop_footer
      %s23 = sadd.s32 1, %s19
    $region7: #{_epipolar_pallas.1} parent=1 // loop_footer_branch
      %18 = sbr.rel target = $region3
    $region8: #{_epipolar_pallas.1} parent=1 // loop_exit
      _
    %479 = vsyncpa [#allocation7], 1
    %s480 = scalar_lea.sflag [#allocation7], 1
    %481 = vsyncpa %s480, 1

</llo_original>
